<compile_context>
chip_gen: v7x
topology: tpu7x:2x2x1
jax: 0.10.0
libtpu: 0.0.40
codegen_flags: <defaults>
</compile_context>

<pallas_src>
import jax
import jax.numpy as jnp
import numpy as np
from jax.experimental import pallas as pl
from jax.experimental.pallas import tpu as pltpu


# ----------------------------------------------------------------------------
# Pass 1: per-row softmax, accumulate probability column-sums.
# Output is (n_splits * 8, V) partial sums; final mean/KL done outside.
# ----------------------------------------------------------------------------
def _prob_sum_kernel(x_ref, psum_ref):
    j = pl.program_id(1)

    @pl.when(j == 0)
    def _():
        psum_ref[...] = jnp.zeros_like(psum_ref)

    x = x_ref[...].astype(jnp.float32)                  # (TR, V)
    m = jnp.max(x, axis=-1, keepdims=True)
    e = jnp.exp(x - m)
    denom = jnp.sum(e, axis=-1, keepdims=True)          # (TR, 1)
    # per-row reciprocal + broadcast multiply instead of a (TR, V) divide
    p = e * pl.reciprocal(denom, approx=False)
    tr, v = p.shape
    # partial sublane reduction: keep an (8, V) accumulator (lane/sublane aligned)
    psum_ref[...] += jnp.sum(p.reshape(tr // 8, 8, v), axis=0)


# ----------------------------------------------------------------------------
# Pass 2: pure broadcast add of the precomputed adjustment vector.
# ----------------------------------------------------------------------------
def _adjust_kernel(x_ref, adj_ref, out_ref):
    out_ref[...] = (x_ref[...].astype(jnp.float32) + adj_ref[...]).astype(out_ref.dtype)


def _pick_row_tile(n_rows, vocab, vmem_budget_bytes):
    """Largest multiple of 8 that divides n_rows and fits ~6 f32 V-wide buffers."""
    per_row = 6 * vocab * 4
    desired = max(8, min(n_rows, vmem_budget_bytes // per_row))
    desired -= desired % 8
    for t in range(desired, 7, -8):
        if n_rows % t == 0:
            return t
    return 8


# ----------------------------------------------------------------------------
# Wrapper
# ----------------------------------------------------------------------------
def token_distribution_regulator(logits, phase_factors, regulation_strength,
                                 target_dist, *,
                                 vmem_budget_bytes=32 * 1024 * 1024,
                                 vmem_limit_bytes=48 * 1024 * 1024):
    """logits: (B, S, V). Returns adjusted logits (B, S, V) in logits.dtype."""
    B, S, V = logits.shape
    N = B * S
    assert N % 8 == 0, "B*S must be a multiple of 8 (sublane tiling)"
    assert V % 128 == 0, "vocab must be a multiple of 128 (lane axis)"

    x = logits.reshape(N, V)                 # keep input dtype (no wrapper upcast)

    row_tile = _pick_row_tile(N, V, vmem_budget_bytes)
    n_tiles = N // row_tile
    n_splits = 2 if (n_tiles >= 2 and n_tiles % 2 == 0) else 1
    tiles_per_split = n_tiles // n_splits

    # --- pass 1: softmax probability column-sums (partial, per split) -------
    psum = pl.pallas_call(
        _prob_sum_kernel,
        out_shape=jax.ShapeDtypeStruct((n_splits * 8, V), jnp.float32),
        grid=(n_splits, tiles_per_split),
        in_specs=[pl.BlockSpec((row_tile, V),
                               lambda c, j: (c * tiles_per_split + j, 0))],
        out_specs=pl.BlockSpec((8, V), lambda c, j: (c, 0)),
        compiler_params=pltpu.CompilerParams(
            dimension_semantics=("parallel", "arbitrary"),
            vmem_limit_bytes=vmem_limit_bytes),
    )(x)

    # --- tiny (V,)-sized epilogue in plain JAX: mean, KL, adjustment --------
    batch_dist = psum.sum(axis=0) / jnp.float32(N)                   # (V,)
    target = target_dist.astype(jnp.float32)
    # F.kl_div(log(batch_dist), target, reduction='batchmean') on a (V,) input
    kl = jnp.sum(target * (jnp.log(target) - jnp.log(batch_dist))) / jnp.float32(V)
    adj = (jnp.tanh(phase_factors.astype(jnp.float32)) *
           regulation_strength.astype(jnp.float32) * kl).reshape(1, V)

    # --- pass 2: out = logits + adj (HBM-streaming broadcast add) -----------
    out = pl.pallas_call(
        _adjust_kernel,
        out_shape=jax.ShapeDtypeStruct((N, V), logits.dtype),
        grid=(n_tiles,),
        in_specs=[pl.BlockSpec((row_tile, V), lambda i: (i, 0)),
                  pl.BlockSpec((1, V), lambda i: (0, 0))],
        out_specs=pl.BlockSpec((row_tile, V), lambda i: (i, 0)),
        compiler_params=pltpu.CompilerParams(
            dimension_semantics=("parallel",),
            vmem_limit_bytes=vmem_limit_bytes),
    )(x, adj)

    return out.reshape(B, S, V)


# ----------------------------------------------------------------------------
# Pure-JAX reference (mirrors the PyTorch forward) for a sanity check
# ----------------------------------------------------------------------------
def _reference(logits, phase_factors, regulation_strength, target_dist):
    p = jax.nn.softmax(logits.astype(jnp.float32), axis=-1)
    batch_dist = p.mean(axis=(0, 1))
    V = logits.shape[-1]
    kl = jnp.sum(target_dist * (jnp.log(target_dist) - jnp.log(batch_dist))) / V
    adj = jnp.tanh(phase_factors) * regulation_strength[0] * kl
    return logits + adj[None, None, :]


if __name__ == "__main__":
    # Module hyperparameters (dim is unused in the forward pass)
    vocab_size = 128
    dim = 32
    B, S = 2, 8

    key = jax.random.PRNGKey(0)
    k_logits, k_phase = jax.random.split(key)

    # Deterministic parameter init, matching shapes in __init__
    regulation_strength = jnp.ones((1,), jnp.float32) * 0.1
    phase_factors = jax.random.normal(k_phase, (vocab_size,), jnp.float32) * 0.02

    # Zipf target distribution buffer
    ranks = jnp.arange(1, vocab_size + 1, dtype=jnp.float32)
    dist = 1.0 / (ranks * jnp.log(ranks + 1.0))
    target_dist = dist / dist.sum()

    logits = jax.random.normal(k_logits, (B, S, vocab_size), jnp.float32)

    out = token_distribution_regulator(
        logits, phase_factors, regulation_strength, target_dist)
    out = jax.block_until_ready(out)

    ref = _reference(logits, phase_factors, regulation_strength, target_dist)
    np.testing.assert_allclose(np.asarray(out), np.asarray(ref), rtol=1e-5, atol=1e-5)

    print("KERNEL_OK")
</pallas_src>

<mosaic_0001>
module attributes {stable_mosaic.version = 11 : i64} {
  func.func @_prob_sum_kernel(%arg0: i32, %arg1: i32, %arg2: memref<16x128xf32, #tpu.memory_space<vmem>>, %arg3: memref<8x128xf32, #tpu.memory_space<vmem>>) attributes {dimension_semantics = [#tpu.dimension_semantics<parallel>, #tpu.dimension_semantics<arbitrary>], iteration_bounds = array<i64: 1, 1>, scalar_prefetch = 0 : i64, scratch_operands = 0 : i64, tpu.core_type = #tpu.core_type<tc>, window_params = [{transform_indices = @transform_0, window_bounds = array<i64: 16, 128>}, {transform_indices = @transform_1, window_bounds = array<i64: 8, 128>}]} {
    %c0_i32 = arith.constant 0 : i32
    %0 = arith.cmpi eq, %arg1, %c0_i32 : i32
    %1 = arith.extui %0 : i1 to i32
    %c0_i32_0 = arith.constant 0 : i32
    %2 = arith.cmpi ne, %1, %c0_i32_0 : i32
    scf.if %2 {
      %cst_8 = arith.constant 0.000000e+00 : f32
      %19 = vector.broadcast %cst_8 : f32 to vector<8x128xf32>
      %c0_9 = arith.constant 0 : index
      %c0_10 = arith.constant 0 : index
      %20 = vector.load %arg3[%c0_9, %c0_10] : memref<8x128xf32, #tpu.memory_space<vmem>>, vector<8x128xf32>
      tpu.vector_store %arg3[%c0_9, %c0_10], %19 {strides = array<i32>} : memref<8x128xf32, #tpu.memory_space<vmem>>, vector<8x128xf32>,
    } else {
    }
    %c0 = arith.constant 0 : index
    %c0_1 = arith.constant 0 : index
    %3 = vector.load %arg2[%c0, %c0_1] : memref<16x128xf32, #tpu.memory_space<vmem>>, vector<16x128xf32>
    %cst = arith.constant dense<0xFF800000> : vector<16xf32>
    %4 = vector.multi_reduction <maximumf>, %3, %cst [1] : vector<16x128xf32> to vector<16xf32>
    %5 = vector.shape_cast %4 : vector<16xf32> to vector<16x1xf32>
    %6 = vector.broadcast %5 : vector<16x1xf32> to vector<16x128xf32>
    %7 = arith.subf %3, %6 : vector<16x128xf32>
    %8 = math.exp %7 : vector<16x128xf32>
    %cst_2 = arith.constant dense<0.000000e+00> : vector<16xf32>
    %9 = vector.multi_reduction <add>, %8, %cst_2 [1] : vector<16x128xf32> to vector<16xf32>
    %10 = vector.shape_cast %9 : vector<16xf32> to vector<16x1xf32>
    %11 = tpu.reciprocal %10 : vector<16x1xf32> -> vector<16x1xf32>
    %12 = vector.broadcast %11 : vector<16x1xf32> to vector<16x128xf32>
    %13 = arith.mulf %8, %12 : vector<16x128xf32>
    %c0_3 = arith.constant 0 : index
    %c0_4 = arith.constant 0 : index
    %14 = vector.load %arg3[%c0_3, %c0_4] : memref<8x128xf32, #tpu.memory_space<vmem>>, vector<8x128xf32>
    %15 = vector.shape_cast %13 : vector<16x128xf32> to vector<2x8x128xf32>
    %cst_5 = arith.constant dense<0.000000e+00> : vector<8x128xf32>
    %16 = vector.multi_reduction <add>, %15, %cst_5 [0] : vector<2x8x128xf32> to vector<8x128xf32>
    %17 = arith.addf %14, %16 : vector<8x128xf32>
    %c0_6 = arith.constant 0 : index
    %c0_7 = arith.constant 0 : index
    %18 = vector.load %arg3[%c0_6, %c0_7] : memref<8x128xf32, #tpu.memory_space<vmem>>, vector<8x128xf32>
    tpu.vector_store %arg3[%c0_6, %c0_7], %17 {strides = array<i32>} : memref<8x128xf32, #tpu.memory_space<vmem>>, vector<8x128xf32>,
    return
  }
  func.func @transform_0(%arg0: i32, %arg1: i32) -> (i32, i32) {
    %c1_i32 = arith.constant 1 : i32
    %0 = arith.muli %arg0, %c1_i32 : i32
    %1 = arith.addi %0, %arg1 : i32
    %c0_i32 = arith.constant 0 : i32
    %c0_i32_0 = arith.constant 0 : i32
    return %1, %c0_i32 : i32, i32
  }
  func.func @transform_1(%arg0: i32, %arg1: i32) -> (i32, i32) {
    %c0_i32 = arith.constant 0 : i32
    %c0_i32_0 = arith.constant 0 : i32
    return %arg0, %c0_i32 : i32, i32
  }
}

</mosaic_0001>

<llo_original>
// kernel: tpu_custom_call.1
$region0: #{tpu_custom_call.1}
  #allocation0 [shape = 'u32[]', space=smem, size = 0x4, offset = 0x4, fixed_abs, tag = 'smem constant byte address 0x4 - core index']
  #allocation1 [shape = 'u32[144,128]{1,0:T(1,128)}', space=vmem, size = 0x12000, scoped, tag = 'internal scratch']
  %s0 = inlined_call_operand.hbm [shape: f32[16,128], index: 0, kind: input, shape index: {}]
  %s1 = inlined_call_operand.hbm [shape: f32[8,128], index: 1, kind: output, shape index: {}]
  %s2 = sld [smem:[#allocation0]]
  $region22: #{tpu_custom_call.1} parent=0
    _
  %s4 = ssub.s32 1, %s2
  %s5 = scalar_select 0, %s4, %s2
  $region1: #{tpu_custom_call.1} parent=0
    #allocation2 [shape = 'u8[8192]{0}', space=vmem, size = 0x2000, scoped, tag = 'input window, operand 0, single buffered']
    #allocation3 [shape = 's32[1]{0}', space=sflag, size = 0x4, scoped, tag = 'scoped memory for tpu_custom_call.1']
    #allocation4 [shape = 's32[1]{0}', space=sflag, size = 0x4, scoped, tag = 'scoped memory for tpu_custom_call.1']
    #allocation5 [shape = 'u8[4096]{0}', space=vmem, size = 0x1000, scoped, tag = 'output window, operand 0, single buffered']
    %6 = vsyncpa [#allocation3], 0
    %7 = vsyncpa [#allocation4], 0
    // Predicated region
    $region2: #{tpu_custom_call.1} parent=1 // pred_check
      _
    $region3: #{tpu_custom_call.1} parent=1 // pred_check_branch
      %9 = sbr.rel (0) target = $region5
    $region4: #{tpu_custom_call.1} parent=1 // pred_region
      %s10 = sadd.s32 0, 0
      %s11 = smul.u32 2, %s10
      %s13 = ssub.s32 256, 256
      %14 = vsyncadd [#allocation3], %s13
      %s15 = smul.addr %s11, 128
      %s16 = scalar_lea.hbm %s0, %s15
      %s17 = sshll.u32 [#allocation2], 4
      %s18 = int_to_ptr.vmem [resolvable:$true] %s17
      %23 = dma.hbm_to_vmem [thread:$0]  %s16, 256, %s18, [#allocation3], 128, 128, 8
    $region5: #{tpu_custom_call.1} parent=1 // pred_fallthru
      _
    // Predicated region
    $region6: #{tpu_custom_call.1} parent=1 // pred_check
      _
    $region7: #{tpu_custom_call.1} parent=1 // pred_check_branch
      %25 = sbr.rel (0) target = $region9
    $region8: #{tpu_custom_call.1} parent=1 // pred_region
      %26 = dma.done [#allocation3], 256
    $region9: #{tpu_custom_call.1} parent=1 // pred_fallthru
      _
    %s27 = sadd.s32 0, 0
    %s28 = smul.u32 2, %s27
    %p29 = scmp.eq.s32.totalorder 0, 0
    // Predicated region
    $region10: #{tpu_custom_call.1} parent=1 // pred_check
      %p30 = pneg %p29
    $region11: #{tpu_custom_call.1} parent=1 // pred_check_branch
      %32 = sbr.rel (%p30) target = $region13
    $region12: #{tpu_custom_call.1} parent=1 // pred_region
      %33 = vst [vmem:[#allocation5] sm:$0xff] 0.0
    $region13: #{tpu_custom_call.1} parent=1 // pred_fallthru
      _
    %v34 = vld [vmem:[#allocation2] sm:$0xff]
    %v35 = vld [vmem:[#allocation2 + $0x8] sm:$0xff]
    %36 = vmax.xlane.f32.xlu0 %v34
    %v37 = vpop.xlane.xlu0 %36
    %38 = vmax.xlane.f32.xlu0 %v35
    %v39 = vpop.xlane.xlu0 %38
    %v40 = vsub.f32 %v34, %v37
    %v41 = vsub.f32 %v35, %v39
    %v42 = vmul.f32 %v40, 1.442695
    %v43 = vpow.pop %v42
    %v44 = vmul.f32 %v41, 1.442695
    %v45 = vpow.pop %v44
    %46 = vadd.xlane.f32.xlu0 %v43
    %v47 = vpop.xlane.xlu0 %46
    %48 = vadd.xlane.f32.xlu0 %v45
    %v49 = vpop.xlane.xlu0 %48
    %v50 = vrcp.pop %v47
    %v51 = vrcp.pop %v49
    %v52 = vmul.f32 %v43, %v50
    %v53 = vmul.f32 %v45, %v51
    %v54 = vld [vmem:[#allocation5] sm:$0xff]
    %v55 = vadd.f32 %v52, %v53
    %v56 = vadd.f32 %v54, %v55
    %57 = vst [vmem:[#allocation5] sm:$0xff] %v56
    // Predicated region
    $region14: #{tpu_custom_call.1} parent=1 // pred_check
      _
    $region15: #{tpu_custom_call.1} parent=1 // pred_check_branch
      %59 = sbr.rel (0) target = $region17
    $region16: #{tpu_custom_call.1} parent=1 // pred_region
      %s61 = ssub.s32 128, 128
      %62 = vsyncadd [#allocation4], %s61
      %s64 = sshll.u32 [#allocation5], 4
      %s65 = int_to_ptr.vmem [resolvable:$true] %s64
      %67 = dma.vmem_to_hbm [thread:$0]  %s65, 128, %s1, [#allocation4]
    $region17: #{tpu_custom_call.1} parent=1 // pred_fallthru
      _
    // Predicated region
    $region18: #{tpu_custom_call.1} parent=1 // pred_check
      _
    $region19: #{tpu_custom_call.1} parent=1 // pred_check_branch
      %69 = sbr.rel (0) target = $region21
    $region20: #{tpu_custom_call.1} parent=1 // pred_region
      %70 = dma.done [#allocation4], 128
    $region21: #{tpu_custom_call.1} parent=1 // pred_fallthru
      _
    %71 = vsyncpa [#allocation3], 1
    %72 = vsyncpa [#allocation4], 1

</llo_original>
